<compile_context>
chip_gen: v5e
topology: v5e:2x2
jax: 0.10.0
libtpu: 0.0.40
codegen_flags: <defaults>
</compile_context>

<pallas_src>
import jax
import jax.numpy as jnp
import numpy as np
from jax.experimental import pallas as pl
from jax.experimental.pallas import tpu as pltpu

LEAKY_RATE = 0.1


def _round_up(x, m):
    return (x + m - 1) // m * m


def _gcn1d_fused_kernel(x_ref, t_ref, b_ref, out_ref):
    # x_ref: (TB, C*W) bf16   t_ref: (C*W, OWp) bf16   b_ref: (1, OWp) f32   out_ref: (TB, OWp)
    # bf16 MXU matmul with f32 accumulation; bias + LeakyReLU on the f32 accumulator,
    # cast only at the final (lane-dense) store.
    z = jnp.dot(x_ref[...], t_ref[...], preferred_element_type=jnp.float32)
    z = z + b_ref[...]
    out_ref[...] = jnp.where(z > 0, z, LEAKY_RATE * z).astype(out_ref.dtype)


def prepare_gcn1d_graph_params(graph_a, conv_w, conv_b, *, weight_dtype=jnp.bfloat16):
    """x-independent parameter prep.  Call ONCE per weight update, not per forward.

    Fuses the Conv1d(kernel_size=1) weight into the graph adjacency so the whole graph
    branch becomes one lane-dense MXU matmul:
        T[(c,k), (o,w)] = conv_w[o, c] * graph_a[c, k, w]
        point1_graph    = LeakyReLU( X_flat @ T + bias_flat )        # (B, C*W) @ (C*W, O*W)
    The O*W axis is zero-padded up to a multiple of 128 so output stores are unmasked vst.
    """
    if graph_a.ndim == 4:                      # PyTorch parameter shape (1, C, W, W)
        graph_a = graph_a[0]
    C, W, _ = graph_a.shape
    O = conv_w.shape[0]
    CW, OW = C * W, O * W
    OW_pad = _round_up(OW, 128)

    t_mat = jnp.einsum('oc,ckw->ckow', conv_w.astype(jnp.float32),
                       graph_a.astype(jnp.float32)).reshape(CW, OW)
    bias_flat = jnp.broadcast_to(conv_b.reshape(O, 1), (O, W)).reshape(1, OW)
    if OW_pad != OW:
        t_mat = jnp.pad(t_mat, ((0, 0), (0, OW_pad - OW)))
        bias_flat = jnp.pad(bias_flat, ((0, 0), (0, OW_pad - OW)))
    return t_mat.astype(weight_dtype), bias_flat.astype(jnp.float32), (O, W)


def gcn1d_point_graph(x, t_mat, bias_flat, out_hw, *, batch_tile=1024,
                      activation_dtype=jnp.bfloat16, out_dtype=None):
    """Graph branch: LeakyReLU(Conv1d_k1(matmul(x.unsqueeze(-2), A).squeeze(-2))).

    x: (B, C, W), t_mat: (C*W, OW_pad) [prepared], bias_flat: (1, OW_pad)  ->  (B, O, W)
    """
    B, C, W = x.shape
    O, _ = out_hw
    CW = C * W
    OW = O * W
    OW_pad = t_mat.shape[1]
    out_dtype = x.dtype if out_dtype is None else out_dtype   # bf16 output also supported

    # Mem-bound kernel: halve activation bytes into the MXU.  (In a real pipeline keep the
    # activation bf16 at rest / fuse this cast with the producer.)
    x_flat = x.reshape(B, CW).astype(activation_dtype)

    # Batch tiling: fold B into the block.  No jnp.pad of x (that would rewrite all of x to
    # HBM); Pallas masks the ragged last block's output store, we only trim padded OW cols.
    if B >= batch_tile:
        tb = batch_tile
    elif B >= 16:
        # Mid-size batches: guarantee >= 2 grid steps so the "parallel" axis shards across
        # v7x's two TensorCores (no effect on single-TC v5e/v6e).
        tb = _round_up(pl.cdiv(B, 2), 8)
    else:
        tb = B
    grid = (pl.cdiv(B, tb),)

    # VMEM budget: x tile double-buffered, fused weight + bias single-buffered (constant
    # index_map), output tile double-buffered.  Only raise the scoped limit when the
    # working set approaches the smallest per-generation default (v5e: 16 MiB scoped).
    # For very large C*W, add an innermost "arbitrary" K grid axis with an f32 accumulator
    # instead of shrinking tb (threshold is ~half on v7x's 64 MiB VMEM vs v5e/v6e's 128 MiB).
    isz = lambda dt: np.dtype(dt).itemsize
    vmem_need = (2 * tb * CW * isz(activation_dtype)
                 + 1 * CW * OW_pad * isz(t_mat.dtype)
                 + OW_pad * 4
                 + 2 * tb * OW_pad * isz(out_dtype))
    vmem_limit = None
    if vmem_need > (12 << 20):
        vmem_limit = min(int(vmem_need * 3 // 2) + (2 << 20), 100 << 20)

    def _specs(weight_pipeline_mode):
        wkw = {} if weight_pipeline_mode is None else {"pipeline_mode": weight_pipeline_mode}
        return [
            pl.BlockSpec((tb, CW), lambda i: (i, 0)),                   # x tile (B folded in)
            pl.BlockSpec((CW, OW_pad), lambda i: (0, 0), **wkw),        # fused weight (resident)
            pl.BlockSpec((1, OW_pad), lambda i: (0, 0), **wkw),         # bias (resident)
        ]

    def _run(in_specs):
        return pl.pallas_call(
            _gcn1d_fused_kernel,
            out_shape=jax.ShapeDtypeStruct((B, OW_pad), out_dtype),
            grid_spec=pltpu.PrefetchScalarGridSpec(
                num_scalar_prefetch=0,
                grid=grid,
                in_specs=in_specs,
                out_specs=pl.BlockSpec((tb, OW_pad), lambda i: (i, 0)),  # lane-dense output
            ),
            compiler_params=pltpu.CompilerParams(
                dimension_semantics=("parallel",),
                vmem_limit_bytes=vmem_limit),
        )(x_flat, t_mat, bias_flat)

    try:
        # Grid-invariant operands don't need double buffering: Buffered(1) halves their
        # VMEM footprint (important on v7x as C*W*O*W grows).
        out_flat = _run(_specs(pl.Buffered(1)))
    except Exception:
        # Fallback for JAX builds that don't accept pipeline_mode on the top-level grid.
        out_flat = _run(_specs(None))

    return out_flat[:, :OW].reshape(B, O, W)


def gcn1d_forward(x, graph_a, conv_w, conv_b):
    """Matches GCN1d.forward: computes point1_graph but returns x unchanged.

    The Pallas-computed branch is also returned so it is observable/verifiable.  A strictly
    faithful production path could skip the kernel entirely (the module discards it), and
    would call prepare_gcn1d_graph_params once per weight update, not per forward.
    """
    t_mat, bias_flat, out_hw = prepare_gcn1d_graph_params(graph_a, conv_w, conv_b)
    point1_graph = gcn1d_point_graph(x, t_mat, bias_flat, out_hw)
    return x, point1_graph


if __name__ == "__main__":
    # Small shapes implied by the module: in_channels=4, out_channels=8, graph_width=16.
    B, C_in, C_out, W = 2, 4, 8, 16

    key = jax.random.PRNGKey(0)
    k1, k2, k3, k4 = jax.random.split(key, 4)
    x = jax.random.normal(k1, (B, C_in, W), dtype=jnp.float32)
    graph_a = jax.random.normal(k2, (1, C_in, W, W), dtype=jnp.float32)   # torch.randn param
    conv_w = jax.random.normal(k3, (C_out, C_in), dtype=jnp.float32) * 0.1
    conv_b = jax.random.normal(k4, (C_out, 1), dtype=jnp.float32) * 0.1

    out_x, point1_graph = gcn1d_forward(x, graph_a, conv_w, conv_b)
    point1_graph = jax.block_until_ready(point1_graph)

    # Pure-f32 reference in the original (two-step) contraction order.
    ga = graph_a[0]
    y_ref = jnp.einsum('bck,ckw->bcw', x, ga)
    z_ref = jnp.einsum('oc,bcw->bow', conv_w, y_ref) + conv_b[None, :, :]
    ref = jnp.where(z_ref > 0, z_ref, LEAKY_RATE * z_ref)

    assert jnp.allclose(out_x, x), "forward must return x unchanged"
    # bf16 MXU operands (f32 accumulation) + reordered single-pass contraction -> loose tol.
    max_err = float(jnp.max(jnp.abs(point1_graph - ref)))
    assert jnp.allclose(point1_graph, ref, atol=5e-2, rtol=5e-2), \
        f"graph branch mismatch, max abs err {max_err}"
    print("KERNEL_OK")
</pallas_src>

<mosaic_0001>
module attributes {stable_mosaic.version = 11 : i64} {
  func.func @_gcn1d_fused_kernel(%arg0: i32, %arg1: memref<2x64xbf16, #tpu.memory_space<vmem>>, %arg2: memref<64x128xbf16, #tpu.memory_space<vmem>>, %arg3: memref<1x128xf32, #tpu.memory_space<vmem>>, %arg4: memref<2x128xf32, #tpu.memory_space<vmem>>) attributes {dimension_semantics = [#tpu.dimension_semantics<parallel>], iteration_bounds = array<i64: 1>, scalar_prefetch = 0 : i64, scratch_operands = 0 : i64, tpu.core_type = #tpu.core_type<tc>, window_params = [{transform_indices = @transform_0, window_bounds = array<i64: 2, 64>}, {pipeline_mode = #tpu.pipeline_mode<synchronous>, transform_indices = @transform_1, window_bounds = array<i64: 64, 128>}, {pipeline_mode = #tpu.pipeline_mode<synchronous>, transform_indices = @transform_2, window_bounds = array<i64: 1, 128>}, {transform_indices = @transform_3, window_bounds = array<i64: 2, 128>}]} {
    %c0 = arith.constant 0 : index
    %c0_0 = arith.constant 0 : index
    %0 = vector.load %arg1[%c0, %c0_0] : memref<2x64xbf16, #tpu.memory_space<vmem>>, vector<2x64xbf16>
    %c0_1 = arith.constant 0 : index
    %c0_2 = arith.constant 0 : index
    %1 = vector.load %arg2[%c0_1, %c0_2] : memref<64x128xbf16, #tpu.memory_space<vmem>>, vector<64x128xbf16>
    %cst = arith.constant dense<0.000000e+00> : vector<2x128xf32>
    %2 = tpu.matmul %0, %1, %cst {dimension_numbers = #tpu.dot_dimension_numbers<[1], [0], [0], [1], [0, 0, 1, 1], [], []>} : vector<2x64xbf16>, vector<64x128xbf16>, vector<2x128xf32> -> vector<2x128xf32>
    %c0_3 = arith.constant 0 : index
    %c0_4 = arith.constant 0 : index
    %3 = vector.load %arg3[%c0_3, %c0_4] : memref<1x128xf32, #tpu.memory_space<vmem>>, vector<1x128xf32>
    %4 = vector.broadcast %3 : vector<1x128xf32> to vector<2x128xf32>
    %5 = arith.addf %2, %4 : vector<2x128xf32>
    %cst_5 = arith.constant 0.000000e+00 : f32
    %6 = vector.broadcast %cst_5 : f32 to vector<2x128xf32>
    %7 = arith.cmpf ogt, %5, %6 : vector<2x128xf32>
    %cst_6 = arith.constant 1.000000e-01 : f32
    %8 = vector.broadcast %cst_6 : f32 to vector<2x128xf32>
    %9 = arith.mulf %8, %5 : vector<2x128xf32>
    %10 = arith.select %7, %5, %9 : vector<2x128xi1>, vector<2x128xf32>
    %c0_7 = arith.constant 0 : index
    %c0_8 = arith.constant 0 : index
    %11 = vector.load %arg4[%c0_7, %c0_8] : memref<2x128xf32, #tpu.memory_space<vmem>>, vector<2x128xf32>
    tpu.vector_store %arg4[%c0_7, %c0_8], %10 {strides = array<i32>} : memref<2x128xf32, #tpu.memory_space<vmem>>, vector<2x128xf32>,
    return
  }
  func.func @transform_0(%arg0: i32) -> (i32, i32) {
    %c0_i32 = arith.constant 0 : i32
    %c0_i32_0 = arith.constant 0 : i32
    return %arg0, %c0_i32 : i32, i32
  }
  func.func @transform_1(%arg0: i32) -> (i32, i32) {
    %c0_i32 = arith.constant 0 : i32
    %c0_i32_0 = arith.constant 0 : i32
    %c0_i32_1 = arith.constant 0 : i32
    return %c0_i32, %c0_i32_0 : i32, i32
  }
  func.func @transform_2(%arg0: i32) -> (i32, i32) {
    %c0_i32 = arith.constant 0 : i32
    %c0_i32_0 = arith.constant 0 : i32
    %c0_i32_1 = arith.constant 0 : i32
    return %c0_i32, %c0_i32_0 : i32, i32
  }
  func.func @transform_3(%arg0: i32) -> (i32, i32) {
    %c0_i32 = arith.constant 0 : i32
    %c0_i32_0 = arith.constant 0 : i32
    return %arg0, %c0_i32 : i32, i32
  }
}

module attributes {stable_mosaic.version = 11 : i64} {
  func.func @_gcn1d_fused_kernel(%arg0: i32, %arg1: memref<2x64xbf16, #tpu.memory_space<vmem>>, %arg2: memref<64x128xbf16, #tpu.memory_space<vmem>>, %arg3: memref<1x128xf32, #tpu.memory_space<vmem>>, %arg4: memref<2x128xf32, #tpu.memory_space<vmem>>) attributes {dimension_semantics = [#tpu.dimension_semantics<parallel>], iteration_bounds = array<i64: 1>, scalar_prefetch = 0 : i64, scratch_operands = 0 : i64, tpu.core_type = #tpu.core_type<tc>, window_params = [{transform_indices = @transform_0, window_bounds = array<i64: 2, 64>}, {pipeline_mode = #tpu.pipeline_mode<synchronous>, transform_indices = @transform_1, window_bounds = array<i64: 64, 128>}, {pipeline_mode = #tpu.pipeline_mode<synchronous>, transform_indices = @transform_2, window_bounds = array<i64: 1, 128>}, {transform_indices = @transform_3, window_bounds = array<i64: 2, 128>}]} {
    %c0 = arith.constant 0 : index
    %c0_0 = arith.constant 0 : index
    %0 = vector.load %arg1[%c0, %c0_0] : memref<2x64xbf16, #tpu.memory_space<vmem>>, vector<2x64xbf16>
    %c0_1 = arith.constant 0 : index
    %c0_2 = arith.constant 0 : index
    %1 = vector.load %arg2[%c0_1, %c0_2] : memref<64x128xbf16, #tpu.memory_space<vmem>>, vector<64x128xbf16>
    %cst = arith.constant dense<0.000000e+00> : vector<2x128xf32>
    %2 = tpu.matmul %0, %1, %cst {dimension_numbers = #tpu.dot_dimension_numbers<[1], [0], [0], [1], [0, 0, 1, 1], [], []>} : vector<2x64xbf16>, vector<64x128xbf16>, vector<2x128xf32> -> vector<2x128xf32>
    %c0_3 = arith.constant 0 : index
    %c0_4 = arith.constant 0 : index
    %3 = vector.load %arg3[%c0_3, %c0_4] : memref<1x128xf32, #tpu.memory_space<vmem>>, vector<1x128xf32>
    %4 = vector.broadcast %3 : vector<1x128xf32> to vector<2x128xf32>
    %5 = arith.addf %2, %4 : vector<2x128xf32>
    %cst_5 = arith.constant 0.000000e+00 : f32
    %6 = vector.broadcast %cst_5 : f32 to vector<2x128xf32>
    %7 = arith.cmpf ogt, %5, %6 : vector<2x128xf32>
    %cst_6 = arith.constant 1.000000e-01 : f32
    %8 = vector.broadcast %cst_6 : f32 to vector<2x128xf32>
    %9 = arith.mulf %8, %5 : vector<2x128xf32>
    %10 = arith.select %7, %5, %9 : vector<2x128xi1>, vector<2x128xf32>
    %c0_7 = arith.constant 0 : index
    %c0_8 = arith.constant 0 : index
    %11 = vector.load %arg4[%c0_7, %c0_8] : memref<2x128xf32, #tpu.memory_space<vmem>>, vector<2x128xf32>
    tpu.vector_store %arg4[%c0_7, %c0_8], %10 {strides = array<i32>} : memref<2x128xf32, #tpu.memory_space<vmem>>, vector<2x128xf32>,
    return
  }
  func.func @transform_0(%arg0: i32) -> (i32, i32) {
    %c0_i32 = arith.constant 0 : i32
    %c0_i32_0 = arith.constant 0 : i32
    return %arg0, %c0_i32 : i32, i32
  }
  func.func @transform_1(%arg0: i32) -> (i32, i32) {
    %c0_i32 = arith.constant 0 : i32
    %c0_i32_0 = arith.constant 0 : i32
    %c0_i32_1 = arith.constant 0 : i32
    return %c0_i32, %c0_i32_0 : i32, i32
  }
  func.func @transform_2(%arg0: i32) -> (i32, i32) {
    %c0_i32 = arith.constant 0 : i32
    %c0_i32_0 = arith.constant 0 : i32
    %c0_i32_1 = arith.constant 0 : i32
    return %c0_i32, %c0_i32_0 : i32, i32
  }
  func.func @transform_3(%arg0: i32) -> (i32, i32) {
    %c0_i32 = arith.constant 0 : i32
    %c0_i32_0 = arith.constant 0 : i32
    return %arg0, %c0_i32 : i32, i32
  }
}

</mosaic_0001>

<llo_original>
// kernel: tpu_custom_call.1
$region0: #{tpu_custom_call.1}
  #allocation0 [shape = 'u32[]', space=smem, size = 0x4, offset = 0x4, fixed_abs, tag = 'smem constant byte address 0x4 - core index']
  #allocation1 [shape = 'u32[72,128]{1,0:T(1,128)}', space=vmem, size = 0x9000, scoped, tag = 'internal scratch']
  %s0 = inlined_call_operand.hbm [shape: bf16[2,64], index: 0, kind: input, shape index: {}]
  %s1 = inlined_call_operand.hbm [shape: bf16[64,128], index: 1, kind: input, shape index: {}]
  %s2 = inlined_call_operand.vmem [shape: f32[1,128], index: 2, kind: input, shape index: {}]
  %s3 = inlined_call_operand.hbm [shape: f32[2,128], index: 3, kind: output, shape index: {}]
  %s4 = sld [smem:[#allocation0]]
  $region30: #{tpu_custom_call.1} parent=0
    _
  %s6 = ssub.s32 1, %s4
  %s7 = scalar_select 0, %s6, %s4
  $region1: #{tpu_custom_call.1} parent=0
    #allocation2 [shape = 'u8[512]{0}', space=vmem, size = 0x400, scoped, tag = 'input window, operand 0, single buffered']
    #allocation3 [shape = 's32[1]{0}', space=sflag, size = 0x4, scoped, tag = 'scoped memory for tpu_custom_call.1']
    #allocation4 [shape = 's32[1]{0}', space=sflag, size = 0x4, scoped, tag = 'scoped memory for tpu_custom_call.1']
    #allocation5 [shape = 'u8[16384]{0}', space=vmem, size = 0x4000, scoped, tag = 'input window, operand 1, single buffered']
    #allocation6 [shape = 's32[1]{0}', space=sflag, size = 0x4, scoped, tag = 'scoped memory for tpu_custom_call.1']
    #allocation7 [shape = 'u8[1024]{0}', space=vmem, size = 0x400, scoped, tag = 'output window, operand 0, single buffered']
    %8 = vsyncpa [#allocation3], 0
    %9 = vsyncpa [#allocation6], 0
    %10 = vsyncpa [#allocation4], 0
    // Predicated region
    $region2: #{tpu_custom_call.1} parent=1 // pred_check
      _
    $region3: #{tpu_custom_call.1} parent=1 // pred_check_branch
      %12 = sbr.rel (0) target = $region5
    $region4: #{tpu_custom_call.1} parent=1 // pred_region
      %14 = vsyncadd [#allocation3], 0
      %s16 = sshll.u32 %s0, 4
      %s17 = int_to_ptr.hbm [resolvable:$true] %s16
      %s18 = sshll.u32 [#allocation2], 4
      %s19 = int_to_ptr.vmem [resolvable:$true] %s18
      %21 = dma.hbm_to_vmem [thread:$0]  %s17, 16, %s19, [#allocation3]
    $region5: #{tpu_custom_call.1} parent=1 // pred_fallthru
      _
    // Predicated region
    $region6: #{tpu_custom_call.1} parent=1 // pred_check
      _
    $region7: #{tpu_custom_call.1} parent=1 // pred_check_branch
      %23 = sbr.rel (0) target = $region9
    $region8: #{tpu_custom_call.1} parent=1 // pred_region
      %25 = vsyncadd [#allocation6], 0
      %s26 = sshll.u32 %s1, 4
      %s27 = int_to_ptr.hbm [resolvable:$true] %s26
      %s28 = sshll.u32 [#allocation5], 4
      %s29 = int_to_ptr.vmem [resolvable:$true] %s28
      %34 = dma.hbm_to_vmem [thread:$0]  %s27, 512, %s29, [#allocation6], 64, 64, 4
    $region9: #{tpu_custom_call.1} parent=1 // pred_fallthru
      _
    // Predicated region
    $region10: #{tpu_custom_call.1} parent=1 // pred_check
      _
    $region11: #{tpu_custom_call.1} parent=1 // pred_check_branch
      %36 = sbr.rel (0) target = $region13
    $region12: #{tpu_custom_call.1} parent=1 // pred_region
      _
    $region13: #{tpu_custom_call.1} parent=1 // pred_fallthru
      _
    // Predicated region
    $region14: #{tpu_custom_call.1} parent=1 // pred_check
      _
    $region15: #{tpu_custom_call.1} parent=1 // pred_check_branch
      %38 = sbr.rel (0) target = $region17
    $region16: #{tpu_custom_call.1} parent=1 // pred_region
      %40 = dma.done [#allocation3], 16
    $region17: #{tpu_custom_call.1} parent=1 // pred_fallthru
      _
    // Predicated region
    $region18: #{tpu_custom_call.1} parent=1 // pred_check
      _
    $region19: #{tpu_custom_call.1} parent=1 // pred_check_branch
      %42 = sbr.rel (0) target = $region21
    $region20: #{tpu_custom_call.1} parent=1 // pred_region
      %44 = dma.done [#allocation6], 512
    $region21: #{tpu_custom_call.1} parent=1 // pred_fallthru
      _
    %v46 = vld [vmem:[#allocation2] sm:$0x1]
    %v47 = vld [vmem:[#allocation5] sm:$0xf]
    %v48 = vld [vmem:[#allocation5 + $0x4] sm:$0xf]
    %v49 = vld [vmem:[#allocation5 + $0x8] sm:$0xf]
    %v50 = vld [vmem:[#allocation5 + $0xc] sm:$0xf]
    %v51 = vld [vmem:[#allocation5 + $0x10] sm:$0xf]
    %v52 = vld [vmem:[#allocation5 + $0x14] sm:$0xf]
    %v53 = vld [vmem:[#allocation5 + $0x18] sm:$0xf]
    %v54 = vld [vmem:[#allocation5 + $0x1c] sm:$0xf]
    %v55 = vld [vmem:[%s2] sm:$0x1]
    %v57 = vperm.slane %v55, 0
    %v67 = vunpack.c.l.b16 %v47
    %v68 = vunpack.c.l.b16 %v48
    %v69 = vunpack.c.l.b16 %v49
    %v70 = vunpack.c.l.b16 %v50
    %v71 = vunpack.c.l.b16 %v51
    %v72 = vunpack.c.l.b16 %v52
    %v73 = vunpack.c.l.b16 %v53
    %v74 = vunpack.c.l.b16 %v54
    %v75 = vpack.c.b16 %v68, %v67
    %v76 = vpack.c.b16 %v70, %v69
    %v77 = vpack.c.b16 %v72, %v71
    %v78 = vpack.c.b16 %v74, %v73
    %vm83 = vcmask 523264
    %v85 = vsel %vm83, %v46, 0
    %87 = vmatpush.bf16.msra.mxu0 0
    %88 = vmatpush.bf16.msra.mxu0 0
    %89 = vmatpush.bf16.msra.mxu0 0
    %90 = vmatpush.bf16.msra.mxu0 0
    %91 = vmatpush.bf16.msra.mxu0 %v78
    %92 = vmatpush.bf16.msra.mxu0 %v77
    %93 = vmatpush.bf16.msra.mxu0 %v76
    %94 = vmatpush.bf16.msra.mxu0 %v75
    %95 = vmatmul.bf16.gmra.mxu0 %v85
    %v96 = vpop.f32.mrf.mxu0
    %v97 = vadd.f32 %v57, %v96
    %v98 = vpop.f32.mrf.mxu0
    %99 = vdwg.mxu0
    %vm100 = vcmp.gt.f32.partialorder %v97, 0.0
    %v101 = vmul.f32 %v97, 0.1
    %v102 = vsel %vm100, %v97, %v101
    %103 = vst [vmem:[#allocation7] sm:$0x3] %v102
    // Predicated region
    $region22: #{tpu_custom_call.1} parent=1 // pred_check
      _
    $region23: #{tpu_custom_call.1} parent=1 // pred_check_branch
      %105 = sbr.rel (0) target = $region25
    $region24: #{tpu_custom_call.1} parent=1 // pred_region
      %107 = vsyncadd [#allocation4], 0
      %s109 = sshll.u32 [#allocation7], 4
      %s110 = int_to_ptr.vmem [resolvable:$true] %s109
      %s111 = sshll.u32 %s3, 4
      %s112 = int_to_ptr.hbm [resolvable:$true] %s111
      %114 = dma.vmem_to_hbm [thread:$0]  %s110, 32, %s112, [#allocation4]
    $region25: #{tpu_custom_call.1} parent=1 // pred_fallthru
      _
    // Predicated region
    $region26: #{tpu_custom_call.1} parent=1 // pred_check
      _
    $region27: #{tpu_custom_call.1} parent=1 // pred_check_branch
      %116 = sbr.rel (0) target = $region29
    $region28: #{tpu_custom_call.1} parent=1 // pred_region
      %118 = dma.done [#allocation4], 32
    $region29: #{tpu_custom_call.1} parent=1 // pred_fallthru
      _
    %119 = vsyncpa [#allocation3], 1
    %120 = vsyncpa [#allocation6], 1
    %121 = vsyncpa [#allocation4], 1

// kernel: tpu_custom_call.1
$region0: #{tpu_custom_call.1}
  #allocation0 [shape = 'u32[]', space=smem, size = 0x4, offset = 0x4, fixed_abs, tag = 'smem constant byte address 0x4 - core index']
  #allocation1 [shape = 'u32[72,128]{1,0:T(1,128)}', space=vmem, size = 0x9000, scoped, tag = 'internal scratch']
  %s0 = inlined_call_operand.hbm [shape: bf16[2,64], index: 0, kind: input, shape index: {}]
  %s1 = inlined_call_operand.hbm [shape: bf16[64,128], index: 1, kind: input, shape index: {}]
  %s2 = inlined_call_operand.vmem [shape: f32[1,128], index: 2, kind: input, shape index: {}]
  %s3 = inlined_call_operand.hbm [shape: f32[2,128], index: 3, kind: output, shape index: {}]
  %s4 = sld [smem:[#allocation0]]
  $region30: #{tpu_custom_call.1} parent=0
    _
  %s6 = ssub.s32 1, %s4
  %s7 = scalar_select 0, %s6, %s4
  $region1: #{tpu_custom_call.1} parent=0
    #allocation2 [shape = 'u8[512]{0}', space=vmem, size = 0x400, scoped, tag = 'input window, operand 0, single buffered']
    #allocation3 [shape = 's32[1]{0}', space=sflag, size = 0x4, scoped, tag = 'scoped memory for tpu_custom_call.1']
    #allocation4 [shape = 's32[1]{0}', space=sflag, size = 0x4, scoped, tag = 'scoped memory for tpu_custom_call.1']
    #allocation5 [shape = 'u8[16384]{0}', space=vmem, size = 0x4000, scoped, tag = 'input window, operand 1, single buffered']
    #allocation6 [shape = 's32[1]{0}', space=sflag, size = 0x4, scoped, tag = 'scoped memory for tpu_custom_call.1']
    #allocation7 [shape = 'u8[1024]{0}', space=vmem, size = 0x400, scoped, tag = 'output window, operand 0, single buffered']
    %8 = vsyncpa [#allocation3], 0
    %9 = vsyncpa [#allocation6], 0
    %10 = vsyncpa [#allocation4], 0
    // Predicated region
    $region2: #{tpu_custom_call.1} parent=1 // pred_check
      _
    $region3: #{tpu_custom_call.1} parent=1 // pred_check_branch
      %12 = sbr.rel (0) target = $region5
    $region4: #{tpu_custom_call.1} parent=1 // pred_region
      %14 = vsyncadd [#allocation3], 0
      %s16 = sshll.u32 %s0, 4
      %s17 = int_to_ptr.hbm [resolvable:$true] %s16
      %s18 = sshll.u32 [#allocation2], 4
      %s19 = int_to_ptr.vmem [resolvable:$true] %s18
      %21 = dma.hbm_to_vmem [thread:$0]  %s17, 16, %s19, [#allocation3]
    $region5: #{tpu_custom_call.1} parent=1 // pred_fallthru
      _
    // Predicated region
    $region6: #{tpu_custom_call.1} parent=1 // pred_check
      _
    $region7: #{tpu_custom_call.1} parent=1 // pred_check_branch
      %23 = sbr.rel (0) target = $region9
    $region8: #{tpu_custom_call.1} parent=1 // pred_region
      %25 = vsyncadd [#allocation6], 0
      %s26 = sshll.u32 %s1, 4
      %s27 = int_to_ptr.hbm [resolvable:$true] %s26
      %s28 = sshll.u32 [#allocation5], 4
      %s29 = int_to_ptr.vmem [resolvable:$true] %s28
      %34 = dma.hbm_to_vmem [thread:$0]  %s27, 512, %s29, [#allocation6], 64, 64, 4
    $region9: #{tpu_custom_call.1} parent=1 // pred_fallthru
      _
    // Predicated region
    $region10: #{tpu_custom_call.1} parent=1 // pred_check
      _
    $region11: #{tpu_custom_call.1} parent=1 // pred_check_branch
      %36 = sbr.rel (0) target = $region13
    $region12: #{tpu_custom_call.1} parent=1 // pred_region
      _
    $region13: #{tpu_custom_call.1} parent=1 // pred_fallthru
      _
    // Predicated region
    $region14: #{tpu_custom_call.1} parent=1 // pred_check
      _
    $region15: #{tpu_custom_call.1} parent=1 // pred_check_branch
      %38 = sbr.rel (0) target = $region17
    $region16: #{tpu_custom_call.1} parent=1 // pred_region
      %40 = dma.done [#allocation3], 16
    $region17: #{tpu_custom_call.1} parent=1 // pred_fallthru
      _
    // Predicated region
    $region18: #{tpu_custom_call.1} parent=1 // pred_check
      _
    $region19: #{tpu_custom_call.1} parent=1 // pred_check_branch
      %42 = sbr.rel (0) target = $region21
    $region20: #{tpu_custom_call.1} parent=1 // pred_region
      %44 = dma.done [#allocation6], 512
    $region21: #{tpu_custom_call.1} parent=1 // pred_fallthru
      _
    %v46 = vld [vmem:[#allocation2] sm:$0x1]
    %v47 = vld [vmem:[#allocation5] sm:$0xf]
    %v48 = vld [vmem:[#allocation5 + $0x4] sm:$0xf]
    %v49 = vld [vmem:[#allocation5 + $0x8] sm:$0xf]
    %v50 = vld [vmem:[#allocation5 + $0xc] sm:$0xf]
    %v51 = vld [vmem:[#allocation5 + $0x10] sm:$0xf]
    %v52 = vld [vmem:[#allocation5 + $0x14] sm:$0xf]
    %v53 = vld [vmem:[#allocation5 + $0x18] sm:$0xf]
    %v54 = vld [vmem:[#allocation5 + $0x1c] sm:$0xf]
    %v55 = vld [vmem:[%s2] sm:$0x1]
    %v57 = vperm.slane %v55, 0
    %v67 = vunpack.c.l.b16 %v47
    %v68 = vunpack.c.l.b16 %v48
    %v69 = vunpack.c.l.b16 %v49
    %v70 = vunpack.c.l.b16 %v50
    %v71 = vunpack.c.l.b16 %v51
    %v72 = vunpack.c.l.b16 %v52
    %v73 = vunpack.c.l.b16 %v53
    %v74 = vunpack.c.l.b16 %v54
    %v75 = vpack.c.b16 %v68, %v67
    %v76 = vpack.c.b16 %v70, %v69
    %v77 = vpack.c.b16 %v72, %v71
    %v78 = vpack.c.b16 %v74, %v73
    %vm83 = vcmask 523264
    %v85 = vsel %vm83, %v46, 0
    %87 = vmatpush.bf16.msra.mxu0 0
    %88 = vmatpush.bf16.msra.mxu0 0
    %89 = vmatpush.bf16.msra.mxu0 0
    %90 = vmatpush.bf16.msra.mxu0 0
    %91 = vmatpush.bf16.msra.mxu0 %v78
    %92 = vmatpush.bf16.msra.mxu0 %v77
    %93 = vmatpush.bf16.msra.mxu0 %v76
    %94 = vmatpush.bf16.msra.mxu0 %v75
    %95 = vmatmul.bf16.gmra.mxu0 %v85
    %v96 = vpop.f32.mrf.mxu0
    %v97 = vadd.f32 %v57, %v96
    %v98 = vpop.f32.mrf.mxu0
    %99 = vdwg.mxu0
    %vm100 = vcmp.gt.f32.partialorder %v97, 0.0
    %v101 = vmul.f32 %v97, 0.1
    %v102 = vsel %vm100, %v97, %v101
    %103 = vst [vmem:[#allocation7] sm:$0x3] %v102
    // Predicated region
    $region22: #{tpu_custom_call.1} parent=1 // pred_check
      _
    $region23: #{tpu_custom_call.1} parent=1 // pred_check_branch
      %105 = sbr.rel (0) target = $region25
    $region24: #{tpu_custom_call.1} parent=1 // pred_region
      %107 = vsyncadd [#allocation4], 0
      %s109 = sshll.u32 [#allocation7], 4
      %s110 = int_to_ptr.vmem [resolvable:$true] %s109
      %s111 = sshll.u32 %s3, 4
      %s112 = int_to_ptr.hbm [resolvable:$true] %s111
      %114 = dma.vmem_to_hbm [thread:$0]  %s110, 32, %s112, [#allocation4]
    $region25: #{tpu_custom_call.1} parent=1 // pred_fallthru
      _
    // Predicated region
    $region26: #{tpu_custom_call.1} parent=1 // pred_check
      _
    $region27: #{tpu_custom_call.1} parent=1 // pred_check_branch
      %116 = sbr.rel (0) target = $region29
    $region28: #{tpu_custom_call.1} parent=1 // pred_region
      %118 = dma.done [#allocation4], 32
    $region29: #{tpu_custom_call.1} parent=1 // pred_fallthru
      _
    %119 = vsyncpa [#allocation3], 1
    %120 = vsyncpa [#allocation6], 1
    %121 = vsyncpa [#allocation4], 1

</llo_original>
